<compile_context>
chip_gen: v5e
topology: v5e:2x2
jax: 0.10.0
libtpu: 0.0.40
codegen_flags: <defaults>
</compile_context>

<pallas_src>
import math

import numpy as np
import jax
import jax.numpy as jnp
from jax.experimental import pallas as pl
from jax.experimental.pallas import tpu as pltpu


_VMEM_LIMIT_BYTES = 32 * 1024 * 1024      # explicit scoped-VMEM limit (safe on v5e/v6e/v7x)
_MIN_KERNEL_BYTES = 1 << 20               # below this, XLA swapaxes wins (per-step overhead)
_MIN_KERNEL_DIM = 128                     # both swapped dims below this -> masked narrow stores


def _block_budget_bytes():
    """Per-block byte budget: ~2 MiB on v5e/v6e, ~4 MiB on v7x (higher HBM BW)."""
    kind = ""
    try:
        kind = jax.devices()[0].device_kind.lower()
    except Exception:
        pass
    if "v7" in kind:
        return 4 * 1024 * 1024
    return 2 * 1024 * 1024


def _fit_tile(dim, target, quantum=128):
    """Largest legal tile for an axis of extent `dim`, not exceeding max(target, quantum).

    Legal tiles are the full extent (always allowed) or a positive multiple of
    `quantum` (128 for lane dims, 8 for sublane dims)."""
    if dim <= max(target, quantum):
        return dim
    return max(quantum, (target // quantum) * quantum)


def _pick_tiles_2d(A, B, itemsize, budget_bytes, override=None):
    """Tiles for the main lane-transpose path.

    TM tiles A (A becomes the output's last/lane dim -> keep it the larger one,
    roughly 2:1 vs TN), TN tiles B; TM*TN*itemsize stays within budget."""
    if override is not None:
        return _fit_tile(A, override[0]), _fit_tile(B, override[1])
    elems = max(budget_bytes // max(itemsize, 1), 2 * 128 * 128)
    tn_t = int(math.sqrt(elems / 2.0))
    tn_t = max(128, min(2048, (tn_t // 128) * 128))
    tm_t = min(2048, 2 * tn_t)
    return _fit_tile(A, tm_t), _fit_tile(B, tn_t)


# ----------------------------------------------------------------------------
# Kernels (pure data movement; compute is one XLU tile transpose or a copy)
# ----------------------------------------------------------------------------
def _t2d_kernel(x_ref, o_ref):
    # x block [1, TM, TN] -> o block [1, TN, TM]; single 2-D lane transpose.
    o_ref[0] = x_ref[0].T


def _t2d_mid_kernel(x_ref, o_ref):
    # Swap involves the last dim, with a small tile (<=8) of untouched middle
    # dims riding along: x block [1, TM, TQ, TN] -> o block [1, TN, TQ, TM].
    # Static unrolled loop keeps everything on the well-supported 2-D
    # minor-dims transpose path (avoids a 3-D (2,1,0) Mosaic transpose).
    for q in range(x_ref.shape[2]):
        o_ref[0, :, q, :] = x_ref[0, :, q, :].T


def _row_swap_kernel(x_ref, o_ref):
    # Last (lane) dim untouched: the swap only relocates whole [TR]-rows.
    # x block [1, TA, 1, TB, TR] -> o block [1, TB, 1, TA, TR]; each b is a
    # pure (TA, TR) slab copy, so no in-kernel transpose at all.
    for b in range(x_ref.shape[3]):
        o_ref[0, b, 0, :, :] = x_ref[0, :, 0, b, :]


def _cparams(n_axes):
    return pltpu.CompilerParams(
        dimension_semantics=("parallel",) * n_axes,
        vmem_limit_bytes=_VMEM_LIMIT_BYTES,
    )


# ----------------------------------------------------------------------------
# Wrapper
# ----------------------------------------------------------------------------
def pallas_transpose(x, dims, *, force_kernel=False, tile_override=None):
    """Equivalent of torch.Tensor.transpose(dim0, dim1) via Pallas TPU kernels.

    `force_kernel=True` bypasses the small-shape fallback (used in tests);
    `tile_override=(TM, TN)` forces tile sizes on the main path (tests only).
    """
    nd = x.ndim
    d0, d1 = dims
    d0 = d0 % nd
    d1 = d1 % nd
    if d0 == d1:
        return x
    if d0 > d1:
        d0, d1 = d1, d0

    S = x.shape
    out_shape = list(S)
    out_shape[d0], out_shape[d1] = S[d1], S[d0]
    out_shape = tuple(out_shape)

    # Canonical factorisation  x ~ [P, A, Q, B, R]  ->  out ~ [P, B, Q, A, R]
    P = int(np.prod(S[:d0], dtype=np.int64)) if d0 > 0 else 1
    A = S[d0]
    Q = int(np.prod(S[d0 + 1:d1], dtype=np.int64)) if d1 > d0 + 1 else 1
    B = S[d1]
    R = int(np.prod(S[d1 + 1:], dtype=np.int64)) if d1 < nd - 1 else 1

    itemsize = int(np.dtype(x.dtype).itemsize)
    total_bytes = int(np.prod(S, dtype=np.int64)) * itemsize

    # Small-shape fast path (per perf review): tiny swapped dims or tiny totals
    # are dominated by the ~0.35us/step grid overhead + masked narrow stores.
    if not force_kernel and (max(A, B) < _MIN_KERNEL_DIM or total_bytes < _MIN_KERNEL_BYTES):
        return jnp.swapaxes(x, d0, d1)

    budget = _block_budget_bytes()

    if R == 1 and Q == 1:
        # Swap of the last two (collapsed) dims: canonical lane transpose.
        x3 = x.reshape(P, A, B)
        TM, TN = _pick_tiles_2d(A, B, itemsize, budget, tile_override)
        gP, gA, gB = P, pl.cdiv(A, TM), pl.cdiv(B, TN)
        # Lead with the larger independent axis so v7x megacore sharding splits
        # evenly across the two TensorCores.
        if gA >= gP:
            grid = (gA, gP, gB)
            in_map = lambda i, p, j: (p, i, j)
            out_map = lambda i, p, j: (p, j, i)
        else:
            grid = (gP, gA, gB)
            in_map = lambda p, i, j: (p, i, j)
            out_map = lambda p, i, j: (p, j, i)
        out = pl.pallas_call(
            _t2d_kernel,
            out_shape=jax.ShapeDtypeStruct((P, B, A), x.dtype),
            grid_spec=pltpu.PrefetchScalarGridSpec(
                num_scalar_prefetch=0,
                grid=grid,
                in_specs=[pl.BlockSpec((1, TM, TN), in_map)],
                out_specs=pl.BlockSpec((1, TN, TM), out_map),
            ),
            compiler_params=_cparams(3),
        )(x3)
        return out.reshape(out_shape)

    if R == 1:
        # Swap involves the last dim; untouched middle dims Q are tiled (<=8 per
        # block) via an extra grid axis instead of riding whole in the block.
        x4 = x.reshape(P, A, Q, B)
        TQ = Q if Q <= 8 else 8
        TM, TN = _pick_tiles_2d(
            A, B, itemsize, max(budget // TQ, 2 * 128 * 128 * itemsize))
        out = pl.pallas_call(
            _t2d_mid_kernel,
            out_shape=jax.ShapeDtypeStruct((P, B, Q, A), x.dtype),
            grid_spec=pltpu.PrefetchScalarGridSpec(
                num_scalar_prefetch=0,
                grid=(P, pl.cdiv(Q, TQ), pl.cdiv(A, TM), pl.cdiv(B, TN)),
                in_specs=[pl.BlockSpec((1, TM, TQ, TN),
                                       lambda p, q, i, j: (p, i, q, j))],
                out_specs=pl.BlockSpec((1, TN, TQ, TM),
                                       lambda p, q, i, j: (p, j, q, i)),
            ),
            compiler_params=_cparams(4),
        )(x4)
        return out.reshape(out_shape)

    # Last (lane) dim untouched: only whole [R]-rows move.  R is tiled (lane
    # dim kept large and unmasked), A/B tiles kept small so block bytes stay
    # within budget; per-b slab copies need no in-kernel transpose.
    x5 = x.reshape(P, A, Q, B, R)
    TB = B if B <= 8 else 8
    TR = _fit_tile(R, 2048)                       # multiple of 128 or full R
    elems = max(budget // (itemsize * TB), 8 * 128)
    ta_t = max(8, ((elems // max(TR, 1)) // 8) * 8)
    TA = _fit_tile(A, ta_t, quantum=8)            # multiple of 8 or full A
    out = pl.pallas_call(
        _row_swap_kernel,
        out_shape=jax.ShapeDtypeStruct((P, B, Q, A, R), x.dtype),
        grid_spec=pltpu.PrefetchScalarGridSpec(
            num_scalar_prefetch=0,
            grid=(P, Q, pl.cdiv(A, TA), pl.cdiv(B, TB), pl.cdiv(R, TR)),
            in_specs=[pl.BlockSpec((1, TA, 1, TB, TR),
                                   lambda p, q, i, j, r: (p, i, q, j, r))],
            out_specs=pl.BlockSpec((1, TB, 1, TA, TR),
                                   lambda p, q, i, j, r: (p, j, q, i, r)),
        ),
        compiler_params=_cparams(5),
    )(x5)
    return out.reshape(out_shape)


class Transpose:
    """Pallas-TPU counterpart of the PyTorch `Transpose` module."""

    def __init__(self, shape):
        self.shape = tuple(shape)

    def __call__(self, x):
        return pallas_transpose(x, self.shape)


# ----------------------------------------------------------------------------
if __name__ == "__main__":
    key = jax.random.PRNGKey(0)
    ks = jax.random.split(key, 5)

    # 1) Module usage in fdf_denoise_network: Transpose((1, 2)) around Conv1d,
    #    [batch, seq, channels] -> [batch, channels, seq].  Tiny shape -> the
    #    small-shape fast path (review-recommended jnp.swapaxes fallback).
    x1 = jax.random.normal(ks[0], (2, 8, 32), jnp.float32)
    y1 = jax.block_until_ready(Transpose((1, 2))(x1))
    np.testing.assert_array_equal(np.asarray(y1), np.asarray(jnp.swapaxes(x1, 1, 2)))

    # 2) Main Pallas lane-transpose path, forced, with non-tile-multiple dims
    #    (edge blocks) to verify padded rows/cols never land in valid outputs.
    x2 = jax.random.normal(ks[1], (2, 300, 200), jnp.float32)
    y2 = jax.block_until_ready(
        pallas_transpose(x2, (1, 2), force_kernel=True, tile_override=(128, 128)))
    np.testing.assert_array_equal(np.asarray(y2), np.asarray(jnp.swapaxes(x2, 1, 2)))

    # 3) 4-D, swap of the last two dims (negative-dim form), bf16, forced kernel
    #    (full-extent blocks; dtype-aware tile sizing path).
    x3 = jax.random.normal(ks[2], (2, 4, 16, 16), jnp.bfloat16)
    y3 = jax.block_until_ready(pallas_transpose(x3, (-2, -1), force_kernel=True))
    np.testing.assert_array_equal(np.asarray(y3), np.asarray(jnp.swapaxes(x3, -2, -1)))

    # 4) Swap involving the last dim with untouched middle dims (Q=20 > 8 ->
    #    Q tiled on the grid, edge Q-block masking exercised).
    x4 = jax.random.normal(ks[3], (2, 16, 20, 24), jnp.float32)
    y4 = jax.block_until_ready(pallas_transpose(x4, (1, 3), force_kernel=True))
    np.testing.assert_array_equal(np.asarray(y4), np.asarray(jnp.swapaxes(x4, 1, 3)))

    # 5) Swap with the trailing (lane) dim untouched: row-relocation path with
    #    a non-multiple-of-8 B (edge B-block masking exercised).
    x5 = jax.random.normal(ks[4], (2, 12, 10, 48), jnp.float32)
    y5 = jax.block_until_ready(pallas_transpose(x5, (1, 2), force_kernel=True))
    np.testing.assert_array_equal(np.asarray(y5), np.asarray(jnp.swapaxes(x5, 1, 2)))

    print("KERNEL_OK")
</pallas_src>

<mosaic_0001>
module attributes {stable_mosaic.version = 11 : i64} {
  func.func @_t2d_kernel(%arg0: i32, %arg1: i32, %arg2: i32, %arg3: memref<1x128x128xf32, #tpu.memory_space<vmem>>, %arg4: memref<1x128x128xf32, #tpu.memory_space<vmem>>) attributes {dimension_semantics = [#tpu.dimension_semantics<parallel>, #tpu.dimension_semantics<parallel>, #tpu.dimension_semantics<parallel>], iteration_bounds = array<i64: 3, 2, 2>, scalar_prefetch = 0 : i64, scratch_operands = 0 : i64, tpu.core_type = #tpu.core_type<tc>, window_params = [{transform_indices = @transform_0, window_bounds = array<i64: 1, 128, 128>}, {transform_indices = @transform_1, window_bounds = array<i64: 1, 128, 128>}]} {
    %c0 = arith.constant 0 : index
    %c0_0 = arith.constant 0 : index
    %c0_1 = arith.constant 0 : index
    %0 = vector.load %arg3[%c0, %c0_0, %c0_1] : memref<1x128x128xf32, #tpu.memory_space<vmem>>, vector<1x128x128xf32>
    %1 = vector.shape_cast %0 : vector<1x128x128xf32> to vector<128x128xf32>
    %2 = tpu.transpose %1, [1, 0] : vector<128x128xf32> -> vector<128x128xf32>
    %c0_2 = arith.constant 0 : index
    %c0_3 = arith.constant 0 : index
    %c0_4 = arith.constant 0 : index
    %3 = vector.load %arg4[%c0_2, %c0_3, %c0_4] : memref<1x128x128xf32, #tpu.memory_space<vmem>>, vector<1x128x128xf32>
    %4 = vector.shape_cast %3 : vector<1x128x128xf32> to vector<128x128xf32>
    %5 = vector.shape_cast %2 : vector<128x128xf32> to vector<1x128x128xf32>
    tpu.vector_store %arg4[%c0_2, %c0_3, %c0_4], %5 {strides = array<i32>} : memref<1x128x128xf32, #tpu.memory_space<vmem>>, vector<1x128x128xf32>,
    return
  }
  func.func @transform_0(%arg0: i32, %arg1: i32, %arg2: i32) -> (i32, i32, i32) {
    %c0_i32 = arith.constant 0 : i32
    return %arg1, %arg0, %arg2 : i32, i32, i32
  }
  func.func @transform_1(%arg0: i32, %arg1: i32, %arg2: i32) -> (i32, i32, i32) {
    %c0_i32 = arith.constant 0 : i32
    return %arg1, %arg2, %arg0 : i32, i32, i32
  }
}

</mosaic_0001>

<llo_original>
// kernel: tpu_custom_call.1
$region0: #{tpu_custom_call.1}
  #allocation0 [shape = 'u32[]', space=smem, size = 0x4, offset = 0x4, fixed_abs, tag = 'smem constant byte address 0x4 - core index']
  #allocation1 [shape = 'u32[72,128]{1,0:T(1,128)}', space=vmem, size = 0x9000, scoped, tag = 'internal scratch']
  %s0 = inlined_call_operand.vmem [shape: f32[2,300,200], index: 0, kind: input, shape index: {}]
  %s1 = inlined_call_operand.hbm [shape: f32[2,200,300], index: 1, kind: output, shape index: {}]
  %s2 = sld [smem:[#allocation0]]
  $region89: #{tpu_custom_call.1} parent=0
    _
  %s4 = ssub.s32 1, %s2
  %s5 = scalar_select 0, %s4, %s2
  $region1: #{tpu_custom_call.1} parent=0
    #allocation2 [shape = 'u8[131072]{0}', space=vmem, size = 0x20000, scoped, tag = 'input window, operand 0']
    #allocation3 [shape = 'u8[131072]{0}', space=vmem, size = 0x20000, scoped, tag = 'output window, operand 0']
    #allocation4 [shape = 's32[2]{0}', space=sflag, size = 0x8, scoped, tag = 'scoped memory for tpu_custom_call.1']
    %6 = vsyncpa [#allocation4], 0
    %s7 = scalar_lea.sflag [#allocation4], 1
    %8 = vsyncpa %s7, 0
    loop: start=0, step=1, limit=14
    $region2: #{tpu_custom_call.1} parent=1 // loop_pre_header
      _
    $region3: #{tpu_custom_call.1} parent=1 // loop_header
      %s10 = sphi 0, %s14
      %p11 = scmp.ge.s32.totalorder %s10, 14
      %s17 = sphi 0, %s36
      %s18 = sphi 0, %s32
      %s19 = sphi 0, %s28
      %s20 = sphi 0, %s17
      %s21 = sphi 0, %s18
      %s22 = sphi 0, %s19
      %s23 = sphi 0, %s20
      %s24 = sphi 0, %s21
      %s25 = sphi 0, %s22
      %s43 = sphi 0, %s45
      %s46 = sphi 0, %s43
      %s47 = sphi 0, %s46
      %s63 = sphi 0, %s47
      %s73 = sphi 0, %s75
      %s76 = sphi 0, %s73
      %s77 = sphi 0, %s76
      %s93 = sphi 0, %s77
    $region4: #{tpu_custom_call.1} parent=1 // loop_header_branch
      %13 = sbr.rel (%p11) target = $region8
    $region5: #{tpu_custom_call.1} parent=1 // loop_body
      %s15 = ssub.s32 %s10, 1
      %s16 = ssub.s32 %s10, 2
      %s26 = sadd.s32 1, %s19
      %p27 = scmp.ge.s32.totalorder %s26, 2
      %s28 = scalar_select %p27, 0, %s26
      %s29 = sadd.s32 1, %s18
      %s30 = scalar_select %p27, %s29, %s18
      %p31 = scmp.ge.s32.totalorder %s30, 2
      %s32 = scalar_select %p31, 0, %s30
      %s33 = sadd.s32 1, %s17
      %s34 = scalar_select %p31, %s33, %s17
      %p35 = scmp.ge.s32.totalorder %s34, 3
      %s36 = scalar_select %p35, 0, %s34
      %s37 = ssub.s32 %s18, %s32
      %s38 = ssub.s32 %s17, %s36
      %s39 = sor.u32 %s37, %s38
      %s40 = ssub.s32 %s19, %s28
      %s41 = sor.u32 %s39, %s40
      %p42 = scmp.eq.s32.totalorder %s41, 0
      %s44 = sadd.s32 %s43, 1
      %s45 = scalar_select %p42, %s43, %s44
      %p48 = pneg %p42
      %p49 = scmp.eq.s32.totalorder %s10, 11
      %p50 = por %p48, %p49
      %p51 = scmp.ne.s32.totalorder %s43, %s46
      %p52 = scmp.eq.s32.totalorder %s10, 0
      %p53 = por %p51, %p52
      %p54 = scmp.ne.s32.totalorder %s43, %s46
      %p55 = scmp.eq.s32.totalorder %s15, 11
      %p56 = por %p54, %p55
      %p57 = scmp.ne.s32.totalorder %s46, %s47
      %p58 = scmp.eq.s32.totalorder %s15, 0
      %p59 = por %p57, %p58
      %p60 = scmp.ne.s32.totalorder %s46, %s47
      %p61 = scmp.eq.s32.totalorder %s16, 11
      %p62 = por %p60, %p61
      %p64 = scmp.ne.s32.totalorder %s47, %s63
      %p65 = scmp.eq.s32.totalorder %s16, 0
      %p66 = por %p64, %p65
      %s67 = ssub.s32 %s18, %s32
      %s68 = ssub.s32 %s19, %s28
      %s69 = sor.u32 %s67, %s68
      %s70 = ssub.s32 %s17, %s36
      %s71 = sor.u32 %s69, %s70
      %p72 = scmp.eq.s32.totalorder %s71, 0
      %s74 = sadd.s32 %s73, 1
      %s75 = scalar_select %p72, %s73, %s74
      %p78 = pneg %p72
      %p79 = scmp.eq.s32.totalorder %s10, 11
      %p80 = por %p78, %p79
      %p81 = scmp.ne.s32.totalorder %s73, %s76
      %p82 = scmp.eq.s32.totalorder %s10, 0
      %p83 = por %p81, %p82
      %p84 = scmp.ne.s32.totalorder %s73, %s76
      %p85 = scmp.eq.s32.totalorder %s15, 11
      %p86 = por %p84, %p85
      %p87 = scmp.ne.s32.totalorder %s76, %s77
      %p88 = scmp.eq.s32.totalorder %s15, 0
      %p89 = por %p87, %p88
      %p90 = scmp.ne.s32.totalorder %s76, %s77
      %p91 = scmp.eq.s32.totalorder %s16, 11
      %p92 = por %p90, %p91
      %p94 = scmp.ne.s32.totalorder %s77, %s93
      %p95 = scmp.eq.s32.totalorder %s16, 0
      %p96 = por %p94, %p95
      %p97 = scmp.le.s32.totalorder 1, %s10
      %p98 = scmp.lt.s32.totalorder %s10, 13
      %p99 = pnand %p97, %p98
      %p100 = pneg %p99
      // Predicated region
      $region9: #{tpu_custom_call.1} parent=5 // pred_check
        _
      $region10: #{tpu_custom_call.1} parent=5 // pred_check_branch
        %102 = sbr.rel (%p99) target = $region12
      $region11: #{tpu_custom_call.1} parent=5 // pred_region
        %s103 = ssub.s32 %s10, 1
      $region12: #{tpu_custom_call.1} parent=5 // pred_fallthru
        _
      %p104 = scmp.lt.s32.totalorder %s10, 12
      // Predicated region
      $region13: #{tpu_custom_call.1} parent=5 // pred_check
        %p105 = pneg %p104
      $region14: #{tpu_custom_call.1} parent=5 // pred_check_branch
        %107 = sbr.rel (%p105) target = $region16
      $region15: #{tpu_custom_call.1} parent=5 // pred_region
        // Predicated region
        $region17: #{tpu_custom_call.1} parent=15 // pred_check
          %p108 = pneg %p53
        $region18: #{tpu_custom_call.1} parent=15 // pred_check_branch
          %110 = sbr.rel (%p108) target = $region20
        $region19: #{tpu_custom_call.1} parent=15 // pred_region
          %s111 = sand.u32 %s43, 1
          %s112 = sand.u32 %s43, 1
          %s113 = smul.addr %s112, 128
          %s114 = scalar_lea.vmem [#allocation2], %s113
          %s115 = smul.u32 16, %s17
          %s116 = ssub.s32 38, %s115
          %p117 = scmp.lt.s32.totalorder %s116, 16
          %s118 = scalar_select %p117, %s116, 16
          %s119 = smul.u32 8, %s118
          %p120 = scmp.ne.s32.totalorder 0, %s119
          %s121 = smul.addr %s115, 2
          %s122 = sadd.s32 %s19, %s121
          %s123 = smul.addr %s18, 76
          %s124 = sadd.s32 %s122, %s123
          %s125 = smul.addr %s124, 8
          %s126 = scalar_lea.vmem %s0, %s125
          // Predicated region
          $region21: #{tpu_custom_call.1} parent=19 // pred_check
            %p127 = pneg %p120
          $region22: #{tpu_custom_call.1} parent=19 // pred_check_branch
            %129 = sbr.rel (%p127) target = $region24
          $region23: #{tpu_custom_call.1} parent=19 // pred_region
            // Predicated region
            $region25: #{tpu_custom_call.1} parent=23 // pred_check
              _
            $region26: #{tpu_custom_call.1} parent=23 // pred_check_branch
              %131 = sbr.rel (0) target = $region28
            $region27: #{tpu_custom_call.1} parent=23 // pred_region
              // Predicated region
              $region47: #{tpu_custom_call.1} parent=27 // pred_check
                _
              $region48: #{tpu_custom_call.1} parent=27 // pred_check_branch
                %211 = sbr.rel (0) target = $region50
              $region49: #{tpu_custom_call.1} parent=27 // pred_region
                %s212 = sshrl.u32 %s118, 4
                // While loop
                $region51: #{tpu_custom_call.1} parent=49 // loop_pre_header
                  _
                $region52: #{tpu_custom_call.1} parent=49 // loop_header
                  %s214 = sphi 0, %s216
                  %p215 = scmp.ge.s32.totalorder %s214, %s212
                  %s219 = sphi 0, %s256
                  %s220 = sphi %s126, %s259
                  %s221 = sphi %s114, %s260
                $region53: #{tpu_custom_call.1} parent=49 // loop_header_branch
                  %218 = sbr.rel (%p215) target = $region57
                $region54: #{tpu_custom_call.1} parent=49 // loop_body
                  %v222 = vld [vmem:[%s220] sm:$0xff]
                  %223 = vst [vmem:[%s221] sm:$0xff] %v222
                  %v224 = vld [vmem:[%s220 + $0x10] sm:$0xff]
                  %225 = vst [vmem:[%s221 + $0x8] sm:$0xff] %v224
                  %v226 = vld [vmem:[%s220 + $0x20] sm:$0xff]
                  %227 = vst [vmem:[%s221 + $0x10] sm:$0xff] %v226
                  %v228 = vld [vmem:[%s220 + $0x30] sm:$0xff]
                  %229 = vst [vmem:[%s221 + $0x18] sm:$0xff] %v228
                  %v230 = vld [vmem:[%s220 + $0x40] sm:$0xff]
                  %231 = vst [vmem:[%s221 + $0x20] sm:$0xff] %v230
                  %v232 = vld [vmem:[%s220 + $0x50] sm:$0xff]
                  %233 = vst [vmem:[%s221 + $0x28] sm:$0xff] %v232
                  %v234 = vld [vmem:[%s220 + $0x60] sm:$0xff]
                  %235 = vst [vmem:[%s221 + $0x30] sm:$0xff] %v234
                  %v236 = vld [vmem:[%s220 + $0x70] sm:$0xff]
                  %237 = vst [vmem:[%s221 + $0x38] sm:$0xff] %v236
                  %v238 = vld [vmem:[%s220 + $0x80] sm:$0xff]
                  %239 = vst [vmem:[%s221 + $0x40] sm:$0xff] %v238
                  %v240 = vld [vmem:[%s220 + $0x90] sm:$0xff]
                  %241 = vst [vmem:[%s221 + $0x48] sm:$0xff] %v240
                  %v242 = vld [vmem:[%s220 + $0xa0] sm:$0xff]
                  %243 = vst [vmem:[%s221 + $0x50] sm:$0xff] %v242
                  %v244 = vld [vmem:[%s220 + $0xb0] sm:$0xff]
                  %245 = vst [vmem:[%s221 + $0x58] sm:$0xff] %v244
                  %v246 = vld [vmem:[%s220 + $0xc0] sm:$0xff]
                  %247 = vst [vmem:[%s221 + $0x60] sm:$0xff] %v246
                  %v248 = vld [vmem:[%s220 + $0xd0] sm:$0xff]
                  %249 = vst [vmem:[%s221 + $0x68] sm:$0xff] %v248
                  %v250 = vld [vmem:[%s220 + $0xe0] sm:$0xff]
                  %251 = vst [vmem:[%s221 + $0x70] sm:$0xff] %v250
                  %v252 = vld [vmem:[%s220 + $0xf0] sm:$0xff]
                  %253 = vst [vmem:[%s221 + $0x78] sm:$0xff] %v252
                  %s254 = sadd.s32 1, %s219
                  %p255 = scmp.ge.s32.totalorder %s254, %s212
                  %s256 = scalar_select %p255, 0, %s254
                  %s257 = smul.u32 %s256, 256
                  %s258 = smul.u32 %s256, 128
                  %s259 = scalar_lea.vmem %s126, %s257
                  %s260 = scalar_lea.vmem %s114, %s258 [#allocation2]
                $region55: #{tpu_custom_call.1} parent=49 // loop_footer
                  %s216 = sadd.s32 %s214, 1
                $region56: #{tpu_custom_call.1} parent=49 // loop_footer_branch
                  %213 = sbr.rel target = $region52
                $region57: #{tpu_custom_call.1} parent=49 // loop_exit
                  _
                %s261 = sshrl.u32 %s118, 4
                %s262 = sand.u32 %s118, 15
                %s263 = smul.u32 %s261, 16
                %s264 = smul.u32 16, %s263
                %s265 = scalar_lea.vmem %s126, %s264
                %s266 = smul.u32 8, %s263
                %s267 = scalar_lea.vmem %s114, %s266 [#allocation2]
                // While loop
                $region58: #{tpu_custom_call.1} parent=49 // loop_pre_header
                  _
                $region59: #{tpu_custom_call.1} parent=49 // loop_header
                  %s269 = sphi 0, %s271
                  %p270 = scmp.ge.s32.totalorder %s269, %s262
                  %s274 = sphi 0, %s281
                  %s275 = sphi %s265, %s284
                  %s276 = sphi %s267, %s285
                $region60: #{tpu_custom_call.1} parent=49 // loop_header_branch
                  %273 = sbr.rel (%p270) target = $region64
                $region61: #{tpu_custom_call.1} parent=49 // loop_body
                  %v277 = vld [vmem:[%s275] sm:$0xff]
                  %278 = vst [vmem:[%s276] sm:$0xff] %v277
                  %s279 = sadd.s32 1, %s274
                  %p280 = scmp.ge.s32.totalorder %s279, %s262
                  %s281 = scalar_select %p280, 0, %s279
                  %s282 = smul.u32 %s281, 16
                  %s283 = smul.u32 %s281, 8
                  %s284 = scalar_lea.vmem %s265, %s282
                  %s285 = scalar_lea.vmem %s267, %s283 [#allocation2]
                $region62: #{tpu_custom_call.1} parent=49 // loop_footer
                  %s271 = sadd.s32 %s269, 1
                $region63: #{tpu_custom_call.1} parent=49 // loop_footer_branch
                  %268 = sbr.rel target = $region59
                $region64: #{tpu_custom_call.1} parent=49 // loop_exit
                  _
              $region50: #{tpu_custom_call.1} parent=27 // pred_fallthru
                _
              // Predicated region
              $region65: #{tpu_custom_call.1} parent=27 // pred_check
                _
              $region66: #{tpu_custom_call.1} parent=27 // pred_check_branch
                %287 = sbr.rel target = $region68
              $region67: #{tpu_custom_call.1} parent=27 // pred_region
                _
              $region68: #{tpu_custom_call.1} parent=27 // pred_fallthru
                _
            $region28: #{tpu_custom_call.1} parent=23 // pred_fallthru
              _
            // Predicated region
            $region29: #{tpu_custom_call.1} parent=23 // pred_check
              _
            $region30: #{tpu_custom_call.1} parent=23 // pred_check_branch
              %133 = sbr.rel target = $region32
            $region31: #{tpu_custom_call.1} parent=23 // pred_region
              %s135 = ssub.s32 256, 1
              %s136 = sshrl.u32 %s118, 4
              // While loop
              $region33: #{tpu_custom_call.1} parent=31 // loop_pre_header
                _
              $region34: #{tpu_custom_call.1} parent=31 // loop_header
                %s138 = sphi 0, %s140
                %p139 = scmp.ge.s32.totalorder %s138, %s136
                %s143 = sphi 0, %s180
                %s144 = sphi %s126, %s183
                %s145 = sphi %s114, %s184
              $region35: #{tpu_custom_call.1} parent=31 // loop_header_branch
                %142 = sbr.rel (%p139) target = $region39
              $region36: #{tpu_custom_call.1} parent=31 // loop_body
                %v146 = vld [vmem:[%s144] sm:%s135]
                %147 = vst [vmem:[%s145] sm:%s135] %v146
                %v148 = vld [vmem:[%s144 + $0x10] sm:%s135]
                %149 = vst [vmem:[%s145 + $0x8] sm:%s135] %v148
                %v150 = vld [vmem:[%s144 + $0x20] sm:%s135]
                %151 = vst [vmem:[%s145 + $0x10] sm:%s135] %v150
                %v152 = vld [vmem:[%s144 + $0x30] sm:%s135]
                %153 = vst [vmem:[%s145 + $0x18] sm:%s135] %v152
                %v154 = vld [vmem:[%s144 + $0x40] sm:%s135]
                %155 = vst [vmem:[%s145 + $0x20] sm:%s135] %v154
                %v156 = vld [vmem:[%s144 + $0x50] sm:%s135]
                %157 = vst [vmem:[%s145 + $0x28] sm:%s135] %v156
                %v158 = vld [vmem:[%s144 + $0x60] sm:%s135]
                %159 = vst [vmem:[%s145 + $0x30] sm:%s135] %v158
                %v160 = vld [vmem:[%s144 + $0x70] sm:%s135]
                %161 = vst [vmem:[%s145 + $0x38] sm:%s135] %v160
                %v162 = vld [vmem:[%s144 + $0x80] sm:%s135]
                %163 = vst [vmem:[%s145 + $0x40] sm:%s135] %v162
                %v164 = vld [vmem:[%s144 + $0x90] sm:%s135]
                %165 = vst [vmem:[%s145 + $0x48] sm:%s135] %v164
                %v166 = vld [vmem:[%s144 + $0xa0] sm:%s135]
                %167 = vst [vmem:[%s145 + $0x50] sm:%s135] %v166
                %v168 = vld [vmem:[%s144 + $0xb0] sm:%s135]
                %169 = vst [vmem:[%s145 + $0x58] sm:%s135] %v168
                %v170 = vld [vmem:[%s144 + $0xc0] sm:%s135]
                %171 = vst [vmem:[%s145 + $0x60] sm:%s135] %v170
                %v172 = vld [vmem:[%s144 + $0xd0] sm:%s135]
                %173 = vst [vmem:[%s145 + $0x68] sm:%s135] %v172
                %v174 = vld [vmem:[%s144 + $0xe0] sm:%s135]
                %175 = vst [vmem:[%s145 + $0x70] sm:%s135] %v174
                %v176 = vld [vmem:[%s144 + $0xf0] sm:%s135]
                %177 = vst [vmem:[%s145 + $0x78] sm:%s135] %v176
                %s178 = sadd.s32 1, %s143
                %p179 = scmp.ge.s32.totalorder %s178, %s136
                %s180 = scalar_select %p179, 0, %s178
                %s181 = smul.u32 %s180, 256
                %s182 = smul.u32 %s180, 128
                %s183 = scalar_lea.vmem %s126, %s181
                %s184 = scalar_lea.vmem %s114, %s182 [#allocation2]
              $region37: #{tpu_custom_call.1} parent=31 // loop_footer
                %s140 = sadd.s32 %s138, 1
              $region38: #{tpu_custom_call.1} parent=31 // loop_footer_branch
                %137 = sbr.rel target = $region34
              $region39: #{tpu_custom_call.1} parent=31 // loop_exit
                _
              %s185 = sshrl.u32 %s118, 4
              %s186 = sand.u32 %s118, 15
              %s187 = smul.u32 %s185, 16
              %s188 = smul.u32 16, %s187
              %s189 = scalar_lea.vmem %s126, %s188
              %s190 = smul.u32 8, %s187
              %s191 = scalar_lea.vmem %s114, %s190 [#allocation2]
              // While loop
              $region40: #{tpu_custom_call.1} parent=31 // loop_pre_header
                _
              $region41: #{tpu_custom_call.1} parent=31 // loop_header
                %s193 = sphi 0, %s195
                %p194 = scmp.ge.s32.totalorder %s193, %s186
                %s198 = sphi 0, %s205
                %s199 = sphi %s189, %s208
                %s200 = sphi %s191, %s209
              $region42: #{tpu_custom_call.1} parent=31 // loop_header_branch
                %197 = sbr.rel (%p194) target = $region46
              $region43: #{tpu_custom_call.1} parent=31 // loop_body
                %v201 = vld [vmem:[%s199] sm:%s135]
                %202 = vst [vmem:[%s200] sm:%s135] %v201
                %s203 = sadd.s32 1, %s198
                %p204 = scmp.ge.s32.totalorder %s203, %s186
                %s205 = scalar_select %p204, 0, %s203
                %s206 = smul.u32 %s205, 16
                %s207 = smul.u32 %s205, 8
                %s208 = scalar_lea.vmem %s189, %s206
                %s209 = scalar_lea.vmem %s191, %s207 [#allocation2]
              $region44: #{tpu_custom_call.1} parent=31 // loop_footer
                %s195 = sadd.s32 %s193, 1
              $region45: #{tpu_custom_call.1} parent=31 // loop_footer_branch
                %192 = sbr.rel target = $region41
              $region46: #{tpu_custom_call.1} parent=31 // loop_exit
                _
            $region32: #{tpu_custom_call.1} parent=23 // pred_fallthru
              _
          $region24: #{tpu_custom_call.1} parent=19 // pred_fallthru
            _
          %288 = vnop
        $region20: #{tpu_custom_call.1} parent=15 // pred_fallthru
          _
      $region16: #{tpu_custom_call.1} parent=5 // pred_fallthru
        _
      %p289 = scmp.le.s32.totalorder 1, %s10
      %p290 = scmp.lt.s32.totalorder %s10, 13
      %p291 = pnand %p289, %p290
      %p292 = pneg %p291
      // Predicated region
      $region69: #{tpu_custom_call.1} parent=5 // pred_check
        _
      $region70: #{tpu_custom_call.1} parent=5 // pred_check_branch
        %294 = sbr.rel (%p291) target = $region72
      $region71: #{tpu_custom_call.1} parent=5 // pred_region
        %s295 = ssub.s32 %s10, 1
        %s296 = sand.u32 %s46, 1
        %s297 = sand.u32 %s46, 1
        %s298 = smul.addr %s297, 128
        %s299 = scalar_lea.vmem [#allocation2], %s298
        // Predicated region
        $region73: #{tpu_custom_call.1} parent=71 // pred_check
          %p300 = pneg %p59
        $region74: #{tpu_custom_call.1} parent=71 // pred_check_branch
          %302 = sbr.rel (%p300) target = $region76
        $region75: #{tpu_custom_call.1} parent=71 // pred_region
          _
        $region76: #{tpu_custom_call.1} parent=71 // pred_fallthru
          _
        %s303 = sand.u32 %s46, 1
        %s304 = sand.u32 %s46, 1
        %s305 = smul.addr %s304, 128
        %s306 = scalar_lea.vmem [#allocation2], %s305
        %p307 = pneg %p59
        %p308 = pneg %p56
        %p309 = pneg %p89
        %p310 = pneg %p86
        %s311 = sand.u32 %s76, 1
        %s312 = scalar_lea.sflag [#allocation4], %s311
        %s313 = sand.u32 %s76, 1
        %s314 = smul.addr %s313, 128
        %s315 = scalar_lea.vmem [#allocation3], %s314
        %s316 = smul.u32 16, %s20
        %s317 = ssub.s32 38, %s316
        %p318 = scmp.lt.s32.totalorder %s317, 16
        %s319 = scalar_select %p318, %s317, 16
        %s320 = smul.u32 8, %s319
        %s321 = smul.u32 16, %s22
        %s322 = ssub.s32 25, %s321
        %p323 = scmp.lt.s32.totalorder %s322, 16
        %s324 = scalar_select %p323, %s322, 16
        %s325 = smul.u32 8, %s324
        %v326 = vld [vmem:[%s299] sm:$0xff]
        %v327 = vld [vmem:[%s299 + $0x8] sm:$0xff]
        %v328 = vld [vmem:[%s299 + $0x10] sm:$0xff]
        %v329 = vld [vmem:[%s299 + $0x18] sm:$0xff]
        %v330 = vld [vmem:[%s299 + $0x20] sm:$0xff]
        %v331 = vld [vmem:[%s299 + $0x28] sm:$0xff]
        %v332 = vld [vmem:[%s299 + $0x30] sm:$0xff]
        %v333 = vld [vmem:[%s299 + $0x38] sm:$0xff]
        %v334 = vld [vmem:[%s299 + $0x40] sm:$0xff]
        %v335 = vld [vmem:[%s299 + $0x48] sm:$0xff]
        %v336 = vld [vmem:[%s299 + $0x50] sm:$0xff]
        %v337 = vld [vmem:[%s299 + $0x58] sm:$0xff]
        %v338 = vld [vmem:[%s299 + $0x60] sm:$0xff]
        %v339 = vld [vmem:[%s299 + $0x68] sm:$0xff]
        %v340 = vld [vmem:[%s299 + $0x70] sm:$0xff]
        %v341 = vld [vmem:[%s299 + $0x78] sm:$0xff]
        %342 = vxpose.xlu0.b32.start [1/16] %v326, 128
        %343 = vxpose.xlu0.b32.cont [2/16] %v327, 128
        %344 = vxpose.xlu0.b32.cont [3/16] %v328, 128
        %345 = vxpose.xlu0.b32.cont [4/16] %v329, 128
        %346 = vxpose.xlu0.b32.cont [5/16] %v330, 128
        %347 = vxpose.xlu0.b32.cont [6/16] %v331, 128
        %348 = vxpose.xlu0.b32.cont [7/16] %v332, 128
        %349 = vxpose.xlu0.b32.cont [8/16] %v333, 128
        %350 = vxpose.xlu0.b32.cont [9/16] %v334, 128
        %351 = vxpose.xlu0.b32.cont [10/16] %v335, 128
        %352 = vxpose.xlu0.b32.cont [11/16] %v336, 128
        %353 = vxpose.xlu0.b32.cont [12/16] %v337, 128
        %354 = vxpose.xlu0.b32.cont [13/16] %v338, 128
        %355 = vxpose.xlu0.b32.cont [14/16] %v339, 128
        %356 = vxpose.xlu0.b32.cont [15/16] %v340, 128
        %357 = vxpose.xlu0.b32.end [16/16] %v341, 128
        %v358 = vpop.trf.xlu0
        %v359 = vpop.trf.xlu0
        %v360 = vpop.trf.xlu0
        %v361 = vpop.trf.xlu0
        %v362 = vpop.trf.xlu0
        %v363 = vpop.trf.xlu0
        %v364 = vpop.trf.xlu0
        %v365 = vpop.trf.xlu0
        %v366 = vpop.trf.xlu0
        %v367 = vpop.trf.xlu0
        %v368 = vpop.trf.xlu0
        %v369 = vpop.trf.xlu0
        %v370 = vpop.trf.xlu0
        %v371 = vpop.trf.xlu0
        %v372 = vpop.trf.xlu0
        %v373 = vpop.trf.xlu0
        %374 = vst [vmem:[%s315] sm:$0xff] %v358
        %375 = vst [vmem:[%s315 + $0x8] sm:$0xff] %v359
        %376 = vst [vmem:[%s315 + $0x10] sm:$0xff] %v360
        %377 = vst [vmem:[%s315 + $0x18] sm:$0xff] %v361
        %378 = vst [vmem:[%s315 + $0x20] sm:$0xff] %v362
        %379 = vst [vmem:[%s315 + $0x28] sm:$0xff] %v363
        %380 = vst [vmem:[%s315 + $0x30] sm:$0xff] %v364
        %381 = vst [vmem:[%s315 + $0x38] sm:$0xff] %v365
        %382 = vst [vmem:[%s315 + $0x40] sm:$0xff] %v366
        %383 = vst [vmem:[%s315 + $0x48] sm:$0xff] %v367
        %384 = vst [vmem:[%s315 + $0x50] sm:$0xff] %v368
        %385 = vst [vmem:[%s315 + $0x58] sm:$0xff] %v369
        %386 = vst [vmem:[%s315 + $0x60] sm:$0xff] %v370
        %387 = vst [vmem:[%s315 + $0x68] sm:$0xff] %v371
        %388 = vst [vmem:[%s315 + $0x70] sm:$0xff] %v372
        %389 = vst [vmem:[%s315 + $0x78] sm:$0xff] %v373
        %s390 = sand.u32 %s76, 1
        %s391 = scalar_lea.sflag [#allocation4], %s390
        %s392 = sand.u32 %s76, 1
        %s393 = smul.addr %s392, 128
        %s394 = scalar_lea.vmem [#allocation3], %s393
        // Predicated region
        $region77: #{tpu_custom_call.1} parent=71 // pred_check
          %p395 = pneg %p86
        $region78: #{tpu_custom_call.1} parent=71 // pred_check_branch
          %397 = sbr.rel (%p395) target = $region80
        $region79: #{tpu_custom_call.1} parent=71 // pred_region
          %s398 = smul.u32 16, %s22
          %s399 = ssub.s32 25, %s398
          %p400 = scmp.lt.s32.totalorder %s399, 16
          %s401 = scalar_select %p400, %s399, 16
          %s402 = smul.u32 8, %s401
          %s403 = ssub.s32 128, %s402
          %s404 = sshll.u32 %s403, 4
          %405 = vsyncadd %s391, %s404
          %p406 = scmp.ne.s32.totalorder 0, %s402
          %s407 = smul.addr %s398, 3
          %s408 = sadd.s32 %s20, %s407
          %s409 = smul.addr %s21, 75
          %s410 = sadd.s32 %s408, %s409
          %s411 = smul.addr %s410, 8
          %s412 = scalar_lea.hbm %s1, %s411
          %s413 = smul.u32 8, %s401
          %s414 = sshll.u32 %s394, 4
          %s415 = int_to_ptr.vmem [resolvable:$true] %s414
          %s416 = sshll.u32 %s412, 4
          %s417 = int_to_ptr.hbm [resolvable:$true] %s416
          %s418 = sshll.u32 %s413, 4
          %422 = dma.vmem_to_hbm [thread:$0]  (%p406), %s415, %s418, %s417, %s391, 128, 384, 8
        $region80: #{tpu_custom_call.1} parent=71 // pred_fallthru
          _
      $region72: #{tpu_custom_call.1} parent=5 // pred_fallthru
        _
      %p423 = scmp.le.s32.totalorder 2, %s10
      // Predicated region
      $region81: #{tpu_custom_call.1} parent=5 // pred_check
        %p424 = pneg %p423
      $region82: #{tpu_custom_call.1} parent=5 // pred_check_branch
        %426 = sbr.rel (%p424) target = $region84
      $region83: #{tpu_custom_call.1} parent=5 // pred_region
        %s427 = ssub.s32 %s10, 2
        // Predicated region
        $region85: #{tpu_custom_call.1} parent=83 // pred_check
          %p428 = pneg %p92
        $region86: #{tpu_custom_call.1} parent=83 // pred_check_branch
          %430 = sbr.rel (%p428) target = $region88
        $region87: #{tpu_custom_call.1} parent=83 // pred_region
          %s431 = sand.u32 %s77, 1
          %s432 = scalar_lea.sflag [#allocation4], %s431
          %s433 = sand.u32 %s77, 1
          %s434 = smul.addr %s433, 128
          %s435 = scalar_lea.vmem [#allocation3], %s434
          %437 = dma.done %s432, 2048
        $region88: #{tpu_custom_call.1} parent=83 // pred_fallthru
          _
      $region84: #{tpu_custom_call.1} parent=5 // pred_fallthru
        _
    $region6: #{tpu_custom_call.1} parent=1 // loop_footer
      %s14 = sadd.s32 1, %s10
    $region7: #{tpu_custom_call.1} parent=1 // loop_footer_branch
      %9 = sbr.rel target = $region3
    $region8: #{tpu_custom_call.1} parent=1 // loop_exit
      _
    %438 = vsyncpa [#allocation4], 1
    %s439 = scalar_lea.sflag [#allocation4], 1
    %440 = vsyncpa %s439, 1

</llo_original>
